<compile_context>
chip_gen: v7x
topology: tpu7x:2x2x1
jax: 0.10.0
libtpu: 0.0.40
codegen_flags: <defaults>
</compile_context>

<pallas_src>
import jax
import jax.numpy as jnp
from jax.experimental import pallas as pl
from jax.experimental.pallas import tpu as pltpu

NEG_SLOPE = 0.01  # nn.LeakyReLU default negative_slope


def _make_kernel(num_layers: int):
    """Kernel for the fused (base+prior) MLP, batch on the lane axis."""

    def kernel(x_ref, *refs):
        out_ref = refs[-1]
        params = refs[:-1]

        h = x_ref[...]                                         # [D, tB]
        for i in range(num_layers):
            w = params[2 * i][...]                             # [d_out, d_in]
            b = params[2 * i + 1][...]                         # [d_out, 1]
            h = jnp.dot(w, h, preferred_element_type=jnp.float32) + b
            if i < num_layers - 1:                             # LeakyReLU between hidden layers only
                h = jnp.where(h > 0, h, NEG_SLOPE * h)
        out_ref[...] = h.astype(out_ref.dtype)                 # [1, tB] lane-dense store

    return kernel


def _fuse_params(base_params, prior_params, prior_scale, posterior_scale):
    """Fuse base & prior MLPs into one doubled-width MLP with the blend scales
    folded into the last layer.  Params are PyTorch layout: W [out, in], b [out]."""
    n = len(base_params) // 2
    fused = []

    if prior_scale <= 0:
        # forward() returns basedmodel(x) unscaled in this case
        for i in range(n):
            fused += [base_params[2 * i], base_params[2 * i + 1].reshape(-1, 1)]
        return fused

    for i in range(n):
        wb, bb = base_params[2 * i], base_params[2 * i + 1]
        wp, bp = prior_params[2 * i], prior_params[2 * i + 1]
        first, last = (i == 0), (i == n - 1)
        if last:
            if first:  # single-linear MLP (hidden_sizes == ())
                w = posterior_scale * wb + prior_scale * wp            # [1, D]
            else:
                w = jnp.concatenate([posterior_scale * wb, prior_scale * wp], axis=1)  # [1, 2*H]
            b = (posterior_scale * bb + prior_scale * bp).reshape(-1, 1)
        else:
            if first:
                w = jnp.concatenate([wb, wp], axis=0)                  # [2*H0, D]
            else:
                w = jax.scipy.linalg.block_diag(wb, wp)                # [2*Hi, 2*Hi-1]
            b = jnp.concatenate([bb, bp]).reshape(-1, 1)
        fused += [w, b]
    return fused


def linearnet_forward(x, base_params, prior_params, *, prior_scale=1.0,
                      posterior_scale=1.0, batch_tile=512,
                      compute_dtype=jnp.float32):
    """x: [B, D] float32.  *_params: flat [W0, b0, W1, b1, ...] (PyTorch layout).
    compute_dtype may be jnp.bfloat16 on v6e/v7x; accumulation stays f32."""
    x = jnp.asarray(x, dtype=jnp.float32)
    B, D = x.shape

    fused = _fuse_params(base_params, prior_params, prior_scale, posterior_scale)
    fused = [p.astype(compute_dtype) for p in fused]
    num_layers = len(fused) // 2

    # Batch on the lane axis: pad B up to a tile multiple, transpose to [D, B_pad].
    n_tiles = pl.cdiv(B, batch_tile)
    b_pad = n_tiles * batch_tile
    xt = x.T                                                   # [D, B] layout plumbing
    if b_pad != B:
        xt = jnp.pad(xt, ((0, 0), (0, b_pad - B)))
    xt = xt.astype(compute_dtype)

    x_spec = pl.BlockSpec((D, batch_tile), lambda i: (0, i))
    # Small fused params (< a few tens of KiB) are passed as full-array blocks;
    # constant index map -> loaded once, stays VMEM-resident across the grid.
    param_specs = [pl.BlockSpec(p.shape, lambda i: (0, 0)) for p in fused]
    out_spec = pl.BlockSpec((1, batch_tile), lambda i: (0, i))

    out = pl.pallas_call(
        _make_kernel(num_layers),
        out_shape=jax.ShapeDtypeStruct((1, b_pad), jnp.float32),
        grid_spec=pltpu.PrefetchScalarGridSpec(
            num_scalar_prefetch=0,
            grid=(n_tiles,),
            in_specs=[x_spec] + param_specs,
            out_specs=out_spec,
        ),
        compiler_params=pltpu.CompilerParams(
            dimension_semantics=("parallel",)),
    )(xt, *fused)

    return out[0, :B]                                          # matches torch .squeeze(-1) -> [B]


def init_mlp_params(key, dims):
    """Xavier-normal-ish weights in PyTorch [out, in] layout, zero biases."""
    params = []
    for i in range(len(dims) - 1):
        key, wk = jax.random.split(key)
        fan_in, fan_out = dims[i], dims[i + 1]
        std = (2.0 / (fan_in + fan_out)) ** 0.5
        w = std * jax.random.normal(wk, (fan_out, fan_in), dtype=jnp.float32)
        b = jnp.zeros((fan_out,), dtype=jnp.float32)
        params += [w, b]
    return params, key


def reference_forward(x, base_params, prior_params, prior_scale, posterior_scale):
    """Pure-JAX reference mirroring the PyTorch forward."""
    def run(p):
        h = x
        n = len(p) // 2
        for i in range(n):
            h = h @ p[2 * i].T + p[2 * i + 1]
            if i < n - 1:
                h = jnp.where(h > 0, h, NEG_SLOPE * h)
        return h
    out = run(base_params)
    if prior_scale > 0:
        out = posterior_scale * out + prior_scale * run(prior_params)
    return out.squeeze(-1)


if __name__ == "__main__":
    in_features = 16
    hidden_sizes = (32, 32)
    prior_scale = 1.5
    posterior_scale = 0.5
    batch = 1000          # deliberately NOT a multiple of batch_tile (tests padding path)
    batch_tile = 512      # lane-dense tiles; grid of 2 parallel steps

    dims = [in_features] + list(hidden_sizes) + [1]

    key = jax.random.PRNGKey(0)
    base_params, key = init_mlp_params(key, dims)
    prior_params, key = init_mlp_params(key, dims)
    key, xk = jax.random.split(key)
    x = jax.random.normal(xk, (batch, in_features), dtype=jnp.float32)

    out = linearnet_forward(
        x, base_params, prior_params,
        prior_scale=prior_scale, posterior_scale=posterior_scale,
        batch_tile=batch_tile,
    )
    out = jax.block_until_ready(out)

    ref = reference_forward(x, base_params, prior_params, prior_scale,
                            posterior_scale)
    assert out.shape == (batch,)
    # Scale folding reassociates a couple of fp multiplies -> allow small tolerance.
    assert jnp.allclose(out, ref, atol=1e-4, rtol=1e-4), (
        float(jnp.max(jnp.abs(out - ref))))

    print("KERNEL_OK")
</pallas_src>

<mosaic_0001>
module attributes {stable_mosaic.version = 11 : i64} {
  func.func @kernel(%arg0: i32, %arg1: memref<16x512xf32, #tpu.memory_space<vmem>>, %arg2: memref<64x16xf32, #tpu.memory_space<vmem>>, %arg3: memref<64x1xf32, #tpu.memory_space<vmem>>, %arg4: memref<64x64xf32, #tpu.memory_space<vmem>>, %arg5: memref<64x1xf32, #tpu.memory_space<vmem>>, %arg6: memref<1x64xf32, #tpu.memory_space<vmem>>, %arg7: memref<1x1xf32, #tpu.memory_space<vmem>>, %arg8: memref<1x512xf32, #tpu.memory_space<vmem>>) attributes {dimension_semantics = [#tpu.dimension_semantics<parallel>], iteration_bounds = array<i64: 2>, scalar_prefetch = 0 : i64, scratch_operands = 0 : i64, tpu.core_type = #tpu.core_type<tc>, window_params = [{transform_indices = @transform_0, window_bounds = array<i64: 16, 512>}, {pipeline_mode = #tpu.pipeline_mode<synchronous>, transform_indices = @transform_1, window_bounds = array<i64: 64, 16>}, {pipeline_mode = #tpu.pipeline_mode<synchronous>, transform_indices = @transform_2, window_bounds = array<i64: 64, 1>}, {pipeline_mode = #tpu.pipeline_mode<synchronous>, transform_indices = @transform_3, window_bounds = array<i64: 64, 64>}, {pipeline_mode = #tpu.pipeline_mode<synchronous>, transform_indices = @transform_4, window_bounds = array<i64: 64, 1>}, {pipeline_mode = #tpu.pipeline_mode<synchronous>, transform_indices = @transform_5, window_bounds = array<i64: 1, 64>}, {pipeline_mode = #tpu.pipeline_mode<synchronous>, transform_indices = @transform_6, window_bounds = array<i64: 1, 1>}, {transform_indices = @transform_7, window_bounds = array<i64: 1, 512>}]} {
    %c0 = arith.constant 0 : index
    %c0_0 = arith.constant 0 : index
    %0 = vector.load %arg1[%c0, %c0_0] : memref<16x512xf32, #tpu.memory_space<vmem>>, vector<16x512xf32>
    %c0_1 = arith.constant 0 : index
    %c0_2 = arith.constant 0 : index
    %1 = vector.load %arg2[%c0_1, %c0_2] : memref<64x16xf32, #tpu.memory_space<vmem>>, vector<64x16xf32>
    %c0_3 = arith.constant 0 : index
    %c0_4 = arith.constant 0 : index
    %2 = vector.load %arg3[%c0_3, %c0_4] : memref<64x1xf32, #tpu.memory_space<vmem>>, vector<64x1xf32>
    %cst = arith.constant dense<0.000000e+00> : vector<64x512xf32>
    %3 = tpu.matmul %1, %0, %cst {dimension_numbers = #tpu.dot_dimension_numbers<[1], [0], [0], [1], [0, 0, 1, 1], [], []>} : vector<64x16xf32>, vector<16x512xf32>, vector<64x512xf32> -> vector<64x512xf32>
    %4 = vector.broadcast %2 : vector<64x1xf32> to vector<64x512xf32>
    %5 = arith.addf %3, %4 : vector<64x512xf32>
    %cst_5 = arith.constant 0.000000e+00 : f32
    %6 = vector.broadcast %cst_5 : f32 to vector<64x512xf32>
    %7 = arith.cmpf ogt, %5, %6 : vector<64x512xf32>
    %cst_6 = arith.constant 0.00999999977 : f32
    %8 = vector.broadcast %cst_6 : f32 to vector<64x512xf32>
    %9 = arith.mulf %8, %5 : vector<64x512xf32>
    %10 = arith.select %7, %5, %9 : vector<64x512xi1>, vector<64x512xf32>
    %c0_7 = arith.constant 0 : index
    %c0_8 = arith.constant 0 : index
    %11 = vector.load %arg4[%c0_7, %c0_8] : memref<64x64xf32, #tpu.memory_space<vmem>>, vector<64x64xf32>
    %c0_9 = arith.constant 0 : index
    %c0_10 = arith.constant 0 : index
    %12 = vector.load %arg5[%c0_9, %c0_10] : memref<64x1xf32, #tpu.memory_space<vmem>>, vector<64x1xf32>
    %cst_11 = arith.constant dense<0.000000e+00> : vector<64x512xf32>
    %13 = tpu.matmul %11, %10, %cst_11 {dimension_numbers = #tpu.dot_dimension_numbers<[1], [0], [0], [1], [0, 0, 1, 1], [], []>} : vector<64x64xf32>, vector<64x512xf32>, vector<64x512xf32> -> vector<64x512xf32>
    %14 = vector.broadcast %12 : vector<64x1xf32> to vector<64x512xf32>
    %15 = arith.addf %13, %14 : vector<64x512xf32>
    %cst_12 = arith.constant 0.000000e+00 : f32
    %16 = vector.broadcast %cst_12 : f32 to vector<64x512xf32>
    %17 = arith.cmpf ogt, %15, %16 : vector<64x512xf32>
    %cst_13 = arith.constant 0.00999999977 : f32
    %18 = vector.broadcast %cst_13 : f32 to vector<64x512xf32>
    %19 = arith.mulf %18, %15 : vector<64x512xf32>
    %20 = arith.select %17, %15, %19 : vector<64x512xi1>, vector<64x512xf32>
    %c0_14 = arith.constant 0 : index
    %c0_15 = arith.constant 0 : index
    %21 = vector.load %arg6[%c0_14, %c0_15] : memref<1x64xf32, #tpu.memory_space<vmem>>, vector<1x64xf32>
    %c0_16 = arith.constant 0 : index
    %c0_17 = arith.constant 0 : index
    %22 = vector.load %arg7[%c0_16, %c0_17] : memref<1x1xf32, #tpu.memory_space<vmem>>, vector<1x1xf32>
    %cst_18 = arith.constant dense<0.000000e+00> : vector<1x512xf32>
    %23 = tpu.matmul %21, %20, %cst_18 {dimension_numbers = #tpu.dot_dimension_numbers<[1], [0], [0], [1], [0, 0, 1, 1], [], []>} : vector<1x64xf32>, vector<64x512xf32>, vector<1x512xf32> -> vector<1x512xf32>
    %24 = vector.broadcast %22 : vector<1x1xf32> to vector<1x512xf32>
    %25 = arith.addf %23, %24 : vector<1x512xf32>
    %c0_19 = arith.constant 0 : index
    %c0_20 = arith.constant 0 : index
    %26 = vector.load %arg8[%c0_19, %c0_20] : memref<1x512xf32, #tpu.memory_space<vmem>>, vector<1x512xf32>
    tpu.vector_store %arg8[%c0_19, %c0_20], %25 {strides = array<i32>} : memref<1x512xf32, #tpu.memory_space<vmem>>, vector<1x512xf32>,
    return
  }
  func.func @transform_0(%arg0: i32) -> (i32, i32) {
    %c0_i32 = arith.constant 0 : i32
    %c0_i32_0 = arith.constant 0 : i32
    return %c0_i32, %arg0 : i32, i32
  }
  func.func @transform_1(%arg0: i32) -> (i32, i32) {
    %c0_i32 = arith.constant 0 : i32
    %c0_i32_0 = arith.constant 0 : i32
    %c0_i32_1 = arith.constant 0 : i32
    return %c0_i32, %c0_i32_0 : i32, i32
  }
  func.func @transform_2(%arg0: i32) -> (i32, i32) {
    %c0_i32 = arith.constant 0 : i32
    %c0_i32_0 = arith.constant 0 : i32
    %c0_i32_1 = arith.constant 0 : i32
    return %c0_i32, %c0_i32_0 : i32, i32
  }
  func.func @transform_3(%arg0: i32) -> (i32, i32) {
    %c0_i32 = arith.constant 0 : i32
    %c0_i32_0 = arith.constant 0 : i32
    %c0_i32_1 = arith.constant 0 : i32
    return %c0_i32, %c0_i32_0 : i32, i32
  }
  func.func @transform_4(%arg0: i32) -> (i32, i32) {
    %c0_i32 = arith.constant 0 : i32
    %c0_i32_0 = arith.constant 0 : i32
    %c0_i32_1 = arith.constant 0 : i32
    return %c0_i32, %c0_i32_0 : i32, i32
  }
  func.func @transform_5(%arg0: i32) -> (i32, i32) {
    %c0_i32 = arith.constant 0 : i32
    %c0_i32_0 = arith.constant 0 : i32
    %c0_i32_1 = arith.constant 0 : i32
    return %c0_i32, %c0_i32_0 : i32, i32
  }
  func.func @transform_6(%arg0: i32) -> (i32, i32) {
    %c0_i32 = arith.constant 0 : i32
    %c0_i32_0 = arith.constant 0 : i32
    %c0_i32_1 = arith.constant 0 : i32
    return %c0_i32, %c0_i32_0 : i32, i32
  }
  func.func @transform_7(%arg0: i32) -> (i32, i32) {
    %c0_i32 = arith.constant 0 : i32
    %c0_i32_0 = arith.constant 0 : i32
    return %c0_i32, %arg0 : i32, i32
  }
}

</mosaic_0001>

<llo_original>
// kernel: tpu_custom_call.1
$region0: #{tpu_custom_call.1}
  #allocation0 [shape = 'u32[]', space=smem, size = 0x4, offset = 0x4, fixed_abs, tag = 'smem constant byte address 0x4 - core index']
  #allocation1 [shape = 'u32[144,128]{1,0:T(1,128)}', space=vmem, size = 0x12000, scoped, tag = 'internal scratch']
  #allocation2 [shape = 'f32[1,1]{1,0:T(1,128)S(1)}', space=vmem, size = 0x200, scoped, tag = 'scoped memory for tpu_custom_call.1']
  %s0 = inlined_call_operand.vmem [shape: f32[16,1024], index: 0, kind: input, shape index: {}]
  %s1 = inlined_call_operand.vmem [shape: f32[64,16], index: 1, kind: input, shape index: {}]
  %s2 = inlined_call_operand.vmem [shape: f32[64,1], index: 2, kind: input, shape index: {}]
  %s3 = inlined_call_operand.vmem [shape: f32[64,64], index: 3, kind: input, shape index: {}]
  %s4 = inlined_call_operand.vmem [shape: f32[64,1], index: 4, kind: input, shape index: {}]
  %s5 = inlined_call_operand.vmem [shape: f32[1,64], index: 5, kind: input, shape index: {}]
  %s6 = inlined_call_operand.<no memory space> [shape: f32[1,1], index: 6, kind: input, shape index: {}]
  %s7 = inlined_call_operand.hbm [shape: f32[1,1024], index: 7, kind: output, shape index: {}]
  %s8 = sld [smem:[#allocation0]]
  $region84: #{tpu_custom_call.1} parent=0
    _
  %s10 = ssub.s32 1, %s8
  %s11 = scalar_select 0, %s10, %s8
  %v12 = vstv %s6
  %13 = vst [vmem:[#allocation2] sm:$0x1] %v12
  $region1: #{tpu_custom_call.1} parent=0
    #allocation3 [shape = 'u8[65536]{0}', space=vmem, size = 0x10000, scoped, tag = 'input window, operand 0']
    #allocation4 [shape = 'u8[4096]{0}', space=vmem, size = 0x1000, scoped, tag = 'output window, operand 0']
    #allocation5 [shape = 's32[2]{0}', space=sflag, size = 0x8, scoped, tag = 'scoped memory for tpu_custom_call.1']
    %14 = vsyncpa [#allocation5], 0
    %s15 = scalar_lea.sflag [#allocation5], 1
    %16 = vsyncpa %s15, 0
    loop: start=0, step=1, limit=4
    $region2: #{tpu_custom_call.1} parent=1 // loop_pre_header
      _
    $region3: #{tpu_custom_call.1} parent=1 // loop_header
      %s18 = sphi 0, %s22
      %p19 = scmp.ge.s32.totalorder %s18, 4
      %s28 = sphi 0, %s30
      %s31 = sphi 0, %s28
      %s32 = sphi 0, %s31
      %s48 = sphi 0, %s32
      %s52 = sphi 0, %s52
      %s54 = sphi 0, %s52
      %s55 = sphi 0, %s54
      %s69 = sphi 0, %s55
      %s73 = sphi 0, %s73
      %s75 = sphi 0, %s73
      %s76 = sphi 0, %s75
      %s90 = sphi 0, %s76
      %s94 = sphi 0, %s94
      %s96 = sphi 0, %s94
      %s97 = sphi 0, %s96
      %s111 = sphi 0, %s97
      %s115 = sphi 0, %s115
      %s117 = sphi 0, %s115
      %s118 = sphi 0, %s117
      %s132 = sphi 0, %s118
      %s136 = sphi 0, %s136
      %s138 = sphi 0, %s136
      %s139 = sphi 0, %s138
      %s153 = sphi 0, %s139
      %s157 = sphi 0, %s157
      %s159 = sphi 0, %s157
      %s160 = sphi 0, %s159
      %s174 = sphi 0, %s160
      %s180 = sphi 0, %s182
      %s183 = sphi 0, %s180
      %s184 = sphi 0, %s183
      %s200 = sphi 0, %s184
    $region4: #{tpu_custom_call.1} parent=1 // loop_header_branch
      %21 = sbr.rel (%p19) target = $region8
    $region5: #{tpu_custom_call.1} parent=1 // loop_body
      %s23 = ssub.s32 %s18, 1
      %s24 = ssub.s32 %s18, 2
      %s25 = sadd.s32 %s18, 1
      %s26 = ssub.s32 %s18, %s25
      %p27 = scmp.eq.s32.totalorder %s26, 0
      %s29 = sadd.s32 %s28, 1
      %s30 = scalar_select %p27, %s28, %s29
      %p33 = pneg %p27
      %p34 = scmp.eq.s32.totalorder %s18, 1
      %p35 = por %p33, %p34
      %p36 = scmp.ne.s32.totalorder %s28, %s31
      %p37 = scmp.eq.s32.totalorder %s18, 0
      %p38 = por %p36, %p37
      %p39 = scmp.ne.s32.totalorder %s28, %s31
      %p40 = scmp.eq.s32.totalorder %s23, 1
      %p41 = por %p39, %p40
      %p42 = scmp.ne.s32.totalorder %s31, %s32
      %p43 = scmp.eq.s32.totalorder %s23, 0
      %p44 = por %p42, %p43
      %p45 = scmp.ne.s32.totalorder %s31, %s32
      %p46 = scmp.eq.s32.totalorder %s24, 1
      %p47 = por %p45, %p46
      %p49 = scmp.ne.s32.totalorder %s32, %s48
      %p50 = scmp.eq.s32.totalorder %s24, 0
      %p51 = por %p49, %p50
      %s53 = sadd.s32 %s52, 1
      %p56 = scmp.eq.s32.totalorder %s18, 1
      %p57 = scmp.ne.s32.totalorder %s52, %s54
      %p58 = scmp.eq.s32.totalorder %s18, 0
      %p59 = por %p57, %p58
      %p60 = scmp.ne.s32.totalorder %s52, %s54
      %p61 = scmp.eq.s32.totalorder %s23, 1
      %p62 = por %p60, %p61
      %p63 = scmp.ne.s32.totalorder %s54, %s55
      %p64 = scmp.eq.s32.totalorder %s23, 0
      %p65 = por %p63, %p64
      %p66 = scmp.ne.s32.totalorder %s54, %s55
      %p67 = scmp.eq.s32.totalorder %s24, 1
      %p68 = por %p66, %p67
      %p70 = scmp.ne.s32.totalorder %s55, %s69
      %p71 = scmp.eq.s32.totalorder %s24, 0
      %p72 = por %p70, %p71
      %s74 = sadd.s32 %s73, 1
      %p77 = scmp.eq.s32.totalorder %s18, 1
      %p78 = scmp.ne.s32.totalorder %s73, %s75
      %p79 = scmp.eq.s32.totalorder %s18, 0
      %p80 = por %p78, %p79
      %p81 = scmp.ne.s32.totalorder %s73, %s75
      %p82 = scmp.eq.s32.totalorder %s23, 1
      %p83 = por %p81, %p82
      %p84 = scmp.ne.s32.totalorder %s75, %s76
      %p85 = scmp.eq.s32.totalorder %s23, 0
      %p86 = por %p84, %p85
      %p87 = scmp.ne.s32.totalorder %s75, %s76
      %p88 = scmp.eq.s32.totalorder %s24, 1
      %p89 = por %p87, %p88
      %p91 = scmp.ne.s32.totalorder %s76, %s90
      %p92 = scmp.eq.s32.totalorder %s24, 0
      %p93 = por %p91, %p92
      %s95 = sadd.s32 %s94, 1
      %p98 = scmp.eq.s32.totalorder %s18, 1
      %p99 = scmp.ne.s32.totalorder %s94, %s96
      %p100 = scmp.eq.s32.totalorder %s18, 0
      %p101 = por %p99, %p100
      %p102 = scmp.ne.s32.totalorder %s94, %s96
      %p103 = scmp.eq.s32.totalorder %s23, 1
      %p104 = por %p102, %p103
      %p105 = scmp.ne.s32.totalorder %s96, %s97
      %p106 = scmp.eq.s32.totalorder %s23, 0
      %p107 = por %p105, %p106
      %p108 = scmp.ne.s32.totalorder %s96, %s97
      %p109 = scmp.eq.s32.totalorder %s24, 1
      %p110 = por %p108, %p109
      %p112 = scmp.ne.s32.totalorder %s97, %s111
      %p113 = scmp.eq.s32.totalorder %s24, 0
      %p114 = por %p112, %p113
      %s116 = sadd.s32 %s115, 1
      %p119 = scmp.eq.s32.totalorder %s18, 1
      %p120 = scmp.ne.s32.totalorder %s115, %s117
      %p121 = scmp.eq.s32.totalorder %s18, 0
      %p122 = por %p120, %p121
      %p123 = scmp.ne.s32.totalorder %s115, %s117
      %p124 = scmp.eq.s32.totalorder %s23, 1
      %p125 = por %p123, %p124
      %p126 = scmp.ne.s32.totalorder %s117, %s118
      %p127 = scmp.eq.s32.totalorder %s23, 0
      %p128 = por %p126, %p127
      %p129 = scmp.ne.s32.totalorder %s117, %s118
      %p130 = scmp.eq.s32.totalorder %s24, 1
      %p131 = por %p129, %p130
      %p133 = scmp.ne.s32.totalorder %s118, %s132
      %p134 = scmp.eq.s32.totalorder %s24, 0
      %p135 = por %p133, %p134
      %s137 = sadd.s32 %s136, 1
      %p140 = scmp.eq.s32.totalorder %s18, 1
      %p141 = scmp.ne.s32.totalorder %s136, %s138
      %p142 = scmp.eq.s32.totalorder %s18, 0
      %p143 = por %p141, %p142
      %p144 = scmp.ne.s32.totalorder %s136, %s138
      %p145 = scmp.eq.s32.totalorder %s23, 1
      %p146 = por %p144, %p145
      %p147 = scmp.ne.s32.totalorder %s138, %s139
      %p148 = scmp.eq.s32.totalorder %s23, 0
      %p149 = por %p147, %p148
      %p150 = scmp.ne.s32.totalorder %s138, %s139
      %p151 = scmp.eq.s32.totalorder %s24, 1
      %p152 = por %p150, %p151
      %p154 = scmp.ne.s32.totalorder %s139, %s153
      %p155 = scmp.eq.s32.totalorder %s24, 0
      %p156 = por %p154, %p155
      %s158 = sadd.s32 %s157, 1
      %p161 = scmp.eq.s32.totalorder %s18, 1
      %p162 = scmp.ne.s32.totalorder %s157, %s159
      %p163 = scmp.eq.s32.totalorder %s18, 0
      %p164 = por %p162, %p163
      %p165 = scmp.ne.s32.totalorder %s157, %s159
      %p166 = scmp.eq.s32.totalorder %s23, 1
      %p167 = por %p165, %p166
      %p168 = scmp.ne.s32.totalorder %s159, %s160
      %p169 = scmp.eq.s32.totalorder %s23, 0
      %p170 = por %p168, %p169
      %p171 = scmp.ne.s32.totalorder %s159, %s160
      %p172 = scmp.eq.s32.totalorder %s24, 1
      %p173 = por %p171, %p172
      %p175 = scmp.ne.s32.totalorder %s160, %s174
      %p176 = scmp.eq.s32.totalorder %s24, 0
      %p177 = por %p175, %p176
      %s178 = ssub.s32 %s18, %s25
      %p179 = scmp.eq.s32.totalorder %s178, 0
      %s181 = sadd.s32 %s180, 1
      %s182 = scalar_select %p179, %s180, %s181
      %p185 = pneg %p179
      %p186 = scmp.eq.s32.totalorder %s18, 1
      %p187 = por %p185, %p186
      %p188 = scmp.ne.s32.totalorder %s180, %s183
      %p189 = scmp.eq.s32.totalorder %s18, 0
      %p190 = por %p188, %p189
      %p191 = scmp.ne.s32.totalorder %s180, %s183
      %p192 = scmp.eq.s32.totalorder %s23, 1
      %p193 = por %p191, %p192
      %p194 = scmp.ne.s32.totalorder %s183, %s184
      %p195 = scmp.eq.s32.totalorder %s23, 0
      %p196 = por %p194, %p195
      %p197 = scmp.ne.s32.totalorder %s183, %s184
      %p198 = scmp.eq.s32.totalorder %s24, 1
      %p199 = por %p197, %p198
      %p201 = scmp.ne.s32.totalorder %s184, %s200
      %p202 = scmp.eq.s32.totalorder %s24, 0
      %p203 = por %p201, %p202
      %p204 = scmp.le.s32.totalorder 1, %s18
      %p205 = scmp.lt.s32.totalorder %s18, 3
      %p206 = pnand %p204, %p205
      %p207 = pneg %p206
      // Predicated region
      $region9: #{tpu_custom_call.1} parent=5 // pred_check
        _
      $region10: #{tpu_custom_call.1} parent=5 // pred_check_branch
        %209 = sbr.rel (%p206) target = $region12
      $region11: #{tpu_custom_call.1} parent=5 // pred_region
        %s210 = ssub.s32 %s18, 1
        // Predicated region
        $region13: #{tpu_custom_call.1} parent=11 // pred_check
          %p211 = pneg %p65
        $region14: #{tpu_custom_call.1} parent=11 // pred_check_branch
          %213 = sbr.rel (%p211) target = $region16
        $region15: #{tpu_custom_call.1} parent=11 // pred_region
          _
        $region16: #{tpu_custom_call.1} parent=11 // pred_fallthru
          _
        // Predicated region
        $region17: #{tpu_custom_call.1} parent=11 // pred_check
          %p214 = pneg %p86
        $region18: #{tpu_custom_call.1} parent=11 // pred_check_branch
          %216 = sbr.rel (%p214) target = $region20
        $region19: #{tpu_custom_call.1} parent=11 // pred_region
          _
        $region20: #{tpu_custom_call.1} parent=11 // pred_fallthru
          _
        // Predicated region
        $region21: #{tpu_custom_call.1} parent=11 // pred_check
          %p217 = pneg %p107
        $region22: #{tpu_custom_call.1} parent=11 // pred_check_branch
          %219 = sbr.rel (%p217) target = $region24
        $region23: #{tpu_custom_call.1} parent=11 // pred_region
          _
        $region24: #{tpu_custom_call.1} parent=11 // pred_fallthru
          _
        // Predicated region
        $region25: #{tpu_custom_call.1} parent=11 // pred_check
          %p220 = pneg %p128
        $region26: #{tpu_custom_call.1} parent=11 // pred_check_branch
          %222 = sbr.rel (%p220) target = $region28
        $region27: #{tpu_custom_call.1} parent=11 // pred_region
          _
        $region28: #{tpu_custom_call.1} parent=11 // pred_fallthru
          _
        // Predicated region
        $region29: #{tpu_custom_call.1} parent=11 // pred_check
          %p223 = pneg %p149
        $region30: #{tpu_custom_call.1} parent=11 // pred_check_branch
          %225 = sbr.rel (%p223) target = $region32
        $region31: #{tpu_custom_call.1} parent=11 // pred_region
          _
        $region32: #{tpu_custom_call.1} parent=11 // pred_fallthru
          _
        // Predicated region
        $region33: #{tpu_custom_call.1} parent=11 // pred_check
          %p226 = pneg %p170
        $region34: #{tpu_custom_call.1} parent=11 // pred_check_branch
          %228 = sbr.rel (%p226) target = $region36
        $region35: #{tpu_custom_call.1} parent=11 // pred_region
          _
        $region36: #{tpu_custom_call.1} parent=11 // pred_fallthru
          _
      $region12: #{tpu_custom_call.1} parent=5 // pred_fallthru
        _
      %p229 = scmp.lt.s32.totalorder %s18, 2
      // Predicated region
      $region37: #{tpu_custom_call.1} parent=5 // pred_check
        %p230 = pneg %p229
      $region38: #{tpu_custom_call.1} parent=5 // pred_check_branch
        %232 = sbr.rel (%p230) target = $region40
      $region39: #{tpu_custom_call.1} parent=5 // pred_region
        // Predicated region
        $region41: #{tpu_custom_call.1} parent=39 // pred_check
          %p233 = pneg %p38
        $region42: #{tpu_custom_call.1} parent=39 // pred_check_branch
          %235 = sbr.rel (%p233) target = $region44
        $region43: #{tpu_custom_call.1} parent=39 // pred_region
          %s236 = sand.u32 %s28, 1
          %s237 = sand.u32 %s28, 1
          %s238 = smul.addr %s237, 64
          %s239 = scalar_lea.vmem [#allocation3], %s238
          %s240 = smul.u32 4, %s18
          %s241 = smul.addr %s240, 8
          %s242 = scalar_lea.vmem %s0, %s241
          // Predicated region
          $region45: #{tpu_custom_call.1} parent=43 // pred_check
            _
          $region46: #{tpu_custom_call.1} parent=43 // pred_check_branch
            %244 = sbr.rel (0) target = $region48
          $region47: #{tpu_custom_call.1} parent=43 // pred_region
            // Predicated region
            $region49: #{tpu_custom_call.1} parent=47 // pred_check
              _
            $region50: #{tpu_custom_call.1} parent=47 // pred_check_branch
              %246 = sbr.rel (0) target = $region52
            $region51: #{tpu_custom_call.1} parent=47 // pred_region
              loop: start=0, step=1, limit=1
              $region53: #{tpu_custom_call.1} parent=51 // loop_pre_header
                _
              $region54: #{tpu_custom_call.1} parent=51 // loop_header
                %s248 = sphi 0, %s252
                %p249 = scmp.ge.s32.totalorder %s248, 1
                %s253 = sphi %s242, %s242
                %s254 = sphi %s239, %s239
              $region55: #{tpu_custom_call.1} parent=51 // loop_header_branch
                %251 = sbr.rel (%p249) target = $region59
              $region56: #{tpu_custom_call.1} parent=51 // loop_body
                %v255 = vld [vmem:[%s253] sm:$0xff]
                %256 = vst [vmem:[%s254] sm:$0xff] %v255
                %v257 = vld [vmem:[%s253 + $0x8] sm:$0xff]
                %258 = vst [vmem:[%s254 + $0x8] sm:$0xff] %v257
                %v259 = vld [vmem:[%s253 + $0x10] sm:$0xff]
                %260 = vst [vmem:[%s254 + $0x10] sm:$0xff] %v259
                %v261 = vld [vmem:[%s253 + $0x18] sm:$0xff]
                %262 = vst [vmem:[%s254 + $0x18] sm:$0xff] %v261
                %v263 = vld [vmem:[%s253 + $0x40] sm:$0xff]
                %264 = vst [vmem:[%s254 + $0x20] sm:$0xff] %v263
                %v265 = vld [vmem:[%s253 + $0x48] sm:$0xff]
                %266 = vst [vmem:[%s254 + $0x28] sm:$0xff] %v265
                %v267 = vld [vmem:[%s253 + $0x50] sm:$0xff]
                %268 = vst [vmem:[%s254 + $0x30] sm:$0xff] %v267
                %v269 = vld [vmem:[%s253 + $0x58] sm:$0xff]
                %270 = vst [vmem:[%s254 + $0x38] sm:$0xff] %v269
              $region57: #{tpu_custom_call.1} parent=51 // loop_footer
                %s252 = sadd.s32 1, %s248
              $region58: #{tpu_custom_call.1} parent=51 // loop_footer_branch
                %247 = sbr.rel target = $region54
              $region59: #{tpu_custom_call.1} parent=51 // loop_exit
                _
            $region52: #{tpu_custom_call.1} parent=47 // pred_fallthru
              _
            // Predicated region
            $region60: #{tpu_custom_call.1} parent=47 // pred_check
              _
            $region61: #{tpu_custom_call.1} parent=47 // pred_check_branch
              %272 = sbr.rel target = $region63
            $region62: #{tpu_custom_call.1} parent=47 // pred_region
              _
            $region63: #{tpu_custom_call.1} parent=47 // pred_fallthru
              _
          $region48: #{tpu_custom_call.1} parent=43 // pred_fallthru
            _
          %273 = vnop
        $region44: #{tpu_custom_call.1} parent=39 // pred_fallthru
          _
      $region40: #{tpu_custom_call.1} parent=5 // pred_fallthru
        _
      %p274 = scmp.le.s32.totalorder 1, %s18
      %p275 = scmp.lt.s32.totalorder %s18, 3
      %p276 = pnand %p274, %p275
      %p277 = pneg %p276
      // Predicated region
      $region64: #{tpu_custom_call.1} parent=5 // pred_check
        _
      $region65: #{tpu_custom_call.1} parent=5 // pred_check_branch
        %279 = sbr.rel (%p276) target = $region67
      $region66: #{tpu_custom_call.1} parent=5 // pred_region
        %s280 = ssub.s32 %s18, 1
        %s281 = sand.u32 %s31, 1
        %s282 = sand.u32 %s31, 1
        %s283 = smul.addr %s282, 64
        %s284 = scalar_lea.vmem [#allocation3], %s283
        // Predicated region
        $region68: #{tpu_custom_call.1} parent=66 // pred_check
          %p285 = pneg %p44
        $region69: #{tpu_custom_call.1} parent=66 // pred_check_branch
          %287 = sbr.rel (%p285) target = $region71
        $region70: #{tpu_custom_call.1} parent=66 // pred_region
          _
        $region71: #{tpu_custom_call.1} parent=66 // pred_fallthru
          _
        %s288 = sand.u32 %s31, 1
        %s289 = sand.u32 %s31, 1
        %s290 = smul.addr %s289, 64
        %s291 = scalar_lea.vmem [#allocation3], %s290
        %p292 = pneg %p44
        %p293 = pneg %p41
        %p294 = pneg %p65
        %p295 = pneg %p62
        %p296 = pneg %p86
        %p297 = pneg %p83
        %p298 = pneg %p107
        %p299 = pneg %p104
        %p300 = pneg %p128
        %p301 = pneg %p125
        %p302 = pneg %p149
        %p303 = pneg %p146
        %p304 = pneg %p170
        %p305 = pneg %p167
        %p306 = pneg %p196
        %p307 = pneg %p193
        %s308 = sand.u32 %s183, 1
        %s309 = scalar_lea.sflag [#allocation5], %s308
        %s310 = sand.u32 %s183, 1
        %s311 = smul.addr %s310, 4
        %s312 = scalar_lea.vmem [#allocation4], %s311
        %s313 = smul.u32 4, %s23
        %s314 = smul.u32 4, %s23
        %v315 = vld [vmem:[%s284] sm:$0xff]
        %v316 = vld [vmem:[%s284 + $0x8] sm:$0xff]
        %v317 = vld [vmem:[%s284 + $0x10] sm:$0xff]
        %v318 = vld [vmem:[%s284 + $0x18] sm:$0xff]
        %v319 = vld [vmem:[%s284 + $0x20] sm:$0xff]
        %v320 = vld [vmem:[%s284 + $0x28] sm:$0xff]
        %v321 = vld [vmem:[%s284 + $0x30] sm:$0xff]
        %v322 = vld [vmem:[%s284 + $0x38] sm:$0xff]
        %v323 = vld [vmem:[%s1] sm:$0xff]
        %v324 = vld [vmem:[%s1 + $0x8] sm:$0xff]
        %v325 = vld [vmem:[%s1 + $0x10] sm:$0xff]
        %v326 = vld [vmem:[%s1 + $0x18] sm:$0xff]
        %v327 = vld [vmem:[%s1 + $0x20] sm:$0xff]
        %v328 = vld [vmem:[%s1 + $0x28] sm:$0xff]
        %v329 = vld [vmem:[%s1 + $0x30] sm:$0xff]
        %v330 = vld [vmem:[%s1 + $0x38] sm:$0xff]
        %v331 = vld [vmem:[%s2] sm:$0xff]
        %v332 = vld [vmem:[%s2 + $0x8] sm:$0xff]
        %v333 = vld [vmem:[%s2 + $0x10] sm:$0xff]
        %v334 = vld [vmem:[%s2 + $0x18] sm:$0xff]
        %v335 = vld [vmem:[%s2 + $0x20] sm:$0xff]
        %v336 = vld [vmem:[%s2 + $0x28] sm:$0xff]
        %v337 = vld [vmem:[%s2 + $0x30] sm:$0xff]
        %v338 = vld [vmem:[%s2 + $0x38] sm:$0xff]
        %340 = vset.pattern.permute.xlu0 0
        %341 = vperm.xlu0 %340, %v331
        %v342 = vpop.permute.xlu0 %341
        %345 = vset.pattern.permute.xlu0 0
        %346 = vperm.xlu0 %345, %v332
        %v347 = vpop.permute.xlu0 %346
        %350 = vset.pattern.permute.xlu0 0
        %351 = vperm.xlu0 %350, %v333
        %v352 = vpop.permute.xlu0 %351
        %355 = vset.pattern.permute.xlu0 0
        %356 = vperm.xlu0 %355, %v334
        %v357 = vpop.permute.xlu0 %356
        %360 = vset.pattern.permute.xlu0 0
        %361 = vperm.xlu0 %360, %v335
        %v362 = vpop.permute.xlu0 %361
        %365 = vset.pattern.permute.xlu0 0
        %366 = vperm.xlu0 %365, %v336
        %v367 = vpop.permute.xlu0 %366
        %370 = vset.pattern.permute.xlu0 0
        %371 = vperm.xlu0 %370, %v337
        %v372 = vpop.permute.xlu0 %371
        %375 = vset.pattern.permute.xlu0 0
        %376 = vperm.xlu0 %375, %v338
        %v377 = vpop.permute.xlu0 %376
        %vm379 = vcmask 130048
        %v381 = vsel %vm379, %v323, 0
        %v384 = vsel %vm379, %v324, 0
        %v387 = vsel %vm379, %v325, 0
        %v390 = vsel %vm379, %v326, 0
        %v393 = vsel %vm379, %v327, 0
        %v396 = vsel %vm379, %v328, 0
        %v399 = vsel %vm379, %v329, 0
        %v402 = vsel %vm379, %v330, 0
        %404 = vmatprep.subr.mxu0 %v316
        %405 = vmatpush1.msra.mxu0 %v315
        %406 = vmatprep.subr.mxu0 %v320
        %407 = vmatpush1.msra.mxu0 %v319
        %408 = vmatprep.subr.mxu0 0.0
        %409 = vmatpush1.msra.mxu0 0.0
        %410 = vmatprep.subr.mxu0 0.0
        %411 = vmatpush1.msra.mxu0 0.0
        %412 = vmatprep.subr.mxu0 0.0
        %413 = vmatpush1.msra.mxu0 0.0
        %414 = vmatprep.subr.mxu0 0.0
        %415 = vmatpush1.msra.mxu0 0.0
        %416 = vmatprep.subr.mxu0 0.0
        %417 = vmatpush1.msra.mxu0 0.0
        %418 = vmatprep.subr.mxu0 0.0
        %419 = vmatpush1.msra.mxu0 0.0
        %420 = vmatprep.subr.mxu0 0.0
        %421 = vmatpush1.msra.mxu0 0.0
        %422 = vmatprep.subr.mxu0 0.0
        %423 = vmatpush1.msra.mxu0 0.0
        %424 = vmatprep.subr.mxu0 0.0
        %425 = vmatpush1.msra.mxu0 0.0
        %426 = vmatprep.subr.mxu0 0.0
        %427 = vmatpush1.msra.mxu0 0.0
        %428 = vmatprep.subr.mxu0 0.0
        %429 = vmatpush1.msra.mxu0 0.0
        %430 = vmatprep.subr.mxu0 0.0
        %431 = vmatpush1.msra.mxu0 0.0
        %432 = vmatprep.subr.mxu0 0.0
        %433 = vmatpush1.msra.mxu0 0.0
        %434 = vmatprep.subr.mxu0 0.0
        %435 = vmatpush1.msra.mxu0 0.0
        %436 = vmatprep.subr.mxu0 0.0
        %437 = vmatpush1.msra.mxu0 0.0
        %438 = vmatprep.subr.mxu0 0.0
        %439 = vmatpush1.msra.mxu0 0.0
        %440 = vmatprep.subr.mxu0 0.0
        %441 = vmatpush1.msra.mxu0 0.0
        %442 = vmatprep.subr.mxu0 0.0
        %443 = vmatpush1.msra.mxu0 0.0
        %444 = vmatprep.subr.mxu0 0.0
        %445 = vmatpush1.msra.mxu0 0.0
        %446 = vmatprep.subr.mxu0 0.0
        %447 = vmatpush1.msra.mxu0 0.0
        %448 = vmatprep.subr.mxu0 0.0
        %449 = vmatpush1.msra.mxu0 0.0
        %450 = vmatprep.subr.mxu0 0.0
        %451 = vmatpush1.msra.mxu0 0.0
        %452 = vmatprep.subr.mxu0 0.0
        %453 = vmatpush1.msra.mxu0 0.0
        %454 = vmatprep.subr.mxu0 0.0
        %455 = vmatpush1.msra.mxu0 0.0
        %456 = vmatprep.subr.mxu0 0.0
        %457 = vmatpush1.msra.mxu0 0.0
        %458 = vmatprep.subr.mxu0 0.0
        %459 = vmatpush1.msra.mxu0 0.0
        %460 = vmatprep.subr.mxu0 0.0
        %461 = vmatpush1.msra.mxu0 0.0
        %462 = vmatprep.subr.mxu0 0.0
        %463 = vmatpush1.msra.mxu0 0.0
        %464 = vmatprep.subr.mxu0 0.0
        %465 = vmatpush1.msra.mxu0 0.0
        %466 = vmatprep.subr.mxu0 0.0
        %467 = vmatpush1.msra.mxu0 0.0
        %468 = vmatprep.mubr.f32.mxu0 0.0
        %469 = vmatmul.mubr.f32.gmra.mrb[0].mxu0 %v381
        %v470 = vpop.f32.mrb[0].mxu0
        %v471 = vadd.f32 %v342, %v470
        %v472 = vpop.f32.mrb[0].mxu0
        %v473 = vadd.f32 %v342, %v472
        %474 = vmatprep.mubr.f32.mxu0 0.0
        %475 = vmatmul.mubr.f32.gmra.mrb[0].mxu0 %v384
        %v476 = vpop.f32.mrb[0].mxu0
        %v477 = vadd.f32 %v347, %v476
        %v478 = vpop.f32.mrb[0].mxu0
        %v479 = vadd.f32 %v347, %v478
        %480 = vmatprep.mubr.f32.mxu0 0.0
        %481 = vmatmul.mubr.f32.gmra.mrb[0].mxu0 %v387
        %v482 = vpop.f32.mrb[0].mxu0
        %v483 = vadd.f32 %v352, %v482
        %v484 = vpop.f32.mrb[0].mxu0
        %v485 = vadd.f32 %v352, %v484
        %486 = vmatprep.mubr.f32.mxu0 0.0
        %487 = vmatmul.mubr.f32.gmra.mrb[0].mxu0 %v390
        %v488 = vpop.f32.mrb[0].mxu0
        %v489 = vadd.f32 %v357, %v488
        %v490 = vpop.f32.mrb[0].mxu0
        %v491 = vadd.f32 %v357, %v490
        %492 = vmatprep.mubr.f32.mxu0 0.0
        %493 = vmatmul.mubr.f32.gmra.mrb[0].mxu0 %v393
        %v494 = vpop.f32.mrb[0].mxu0
        %v495 = vadd.f32 %v362, %v494
        %v496 = vpop.f32.mrb[0].mxu0
        %v497 = vadd.f32 %v362, %v496
        %498 = vmatprep.mubr.f32.mxu0 0.0
        %499 = vmatmul.mubr.f32.gmra.mrb[0].mxu0 %v396
        %v500 = vpop.f32.mrb[0].mxu0
        %v501 = vadd.f32 %v367, %v500
        %v502 = vpop.f32.mrb[0].mxu0
        %v503 = vadd.f32 %v367, %v502
        %504 = vmatprep.mubr.f32.mxu0 0.0
        %505 = vmatmul.mubr.f32.gmra.mrb[0].mxu0 %v399
        %v506 = vpop.f32.mrb[0].mxu0
        %v507 = vadd.f32 %v372, %v506
        %v508 = vpop.f32.mrb[0].mxu0
        %v509 = vadd.f32 %v372, %v508
        %510 = vmatprep.mubr.f32.mxu0 0.0
        %511 = vmatmul.mubr.f32.gmra.mrb[0].mxu0 %v402
        %v512 = vpop.f32.mrb[0].mxu0
        %v513 = vadd.f32 %v377, %v512
        %v514 = vpop.f32.mrb[0].mxu0
        %v515 = vadd.f32 %v377, %v514
        %516 = vdwg.mxu0
        %517 = vmatprep.subr.mxu0 %v318
        %518 = vmatpush1.msra.mxu0 %v317
        %519 = vmatprep.subr.mxu0 %v322
        %520 = vmatpush1.msra.mxu0 %v321
        %521 = vmatprep.subr.mxu0 0.0
        %522 = vmatpush1.msra.mxu0 0.0
        %523 = vmatprep.subr.mxu0 0.0
        %524 = vmatpush1.msra.mxu0 0.0
        %525 = vmatprep.subr.mxu0 0.0
        %526 = vmatpush1.msra.mxu0 0.0
        %527 = vmatprep.subr.mxu0 0.0
        %528 = vmatpush1.msra.mxu0 0.0
        %529 = vmatprep.subr.mxu0 0.0
        %530 = vmatpush1.msra.mxu0 0.0
        %531 = vmatprep.subr.mxu0 0.0
        %532 = vmatpush1.msra.mxu0 0.0
        %533 = vmatprep.subr.mxu0 0.0
        %534 = vmatpush1.msra.mxu0 0.0
        %535 = vmatprep.subr.mxu0 0.0
        %536 = vmatpush1.msra.mxu0 0.0
        %537 = vmatprep.subr.mxu0 0.0
        %538 = vmatpush1.msra.mxu0 0.0
        %539 = vmatprep.subr.mxu0 0.0
        %540 = vmatpush1.msra.mxu0 0.0
        %541 = vmatprep.subr.mxu0 0.0
        %542 = vmatpush1.msra.mxu0 0.0
        %543 = vmatprep.subr.mxu0 0.0
        %544 = vmatpush1.msra.mxu0 0.0
        %545 = vmatprep.subr.mxu0 0.0
        %546 = vmatpush1.msra.mxu0 0.0
        %547 = vmatprep.subr.mxu0 0.0
        %548 = vmatpush1.msra.mxu0 0.0
        %549 = vmatprep.subr.mxu0 0.0
        %550 = vmatpush1.msra.mxu0 0.0
        %551 = vmatprep.subr.mxu0 0.0
        %552 = vmatpush1.msra.mxu0 0.0
        %553 = vmatprep.subr.mxu0 0.0
        %554 = vmatpush1.msra.mxu0 0.0
        %555 = vmatprep.subr.mxu0 0.0
        %556 = vmatpush1.msra.mxu0 0.0
        %557 = vmatprep.subr.mxu0 0.0
        %558 = vmatpush1.msra.mxu0 0.0
        %559 = vmatprep.subr.mxu0 0.0
        %560 = vmatpush1.msra.mxu0 0.0
        %561 = vmatprep.subr.mxu0 0.0
        %562 = vmatpush1.msra.mxu0 0.0
        %563 = vmatprep.subr.mxu0 0.0
        %564 = vmatpush1.msra.mxu0 0.0
        %565 = vmatprep.subr.mxu0 0.0
        %566 = vmatpush1.msra.mxu0 0.0
        %567 = vmatprep.subr.mxu0 0.0
        %568 = vmatpush1.msra.mxu0 0.0
        %569 = vmatprep.subr.mxu0 0.0
        %570 = vmatpush1.msra.mxu0 0.0
        %571 = vmatprep.subr.mxu0 0.0
        %572 = vmatpush1.msra.mxu0 0.0
        %573 = vmatprep.subr.mxu0 0.0
        %574 = vmatpush1.msra.mxu0 0.0
        %575 = vmatprep.subr.mxu0 0.0
        %576 = vmatpush1.msra.mxu0 0.0
        %577 = vmatprep.subr.mxu0 0.0
        %578 = vmatpush1.msra.mxu0 0.0
        %579 = vmatprep.subr.mxu0 0.0
        %580 = vmatpush1.msra.mxu0 0.0
        %581 = vmatprep.mubr.f32.mxu0 0.0
        %582 = vmatmul.mubr.f32.gmra.mrb[0].mxu0 %v381
        %v583 = vpop.f32.mrb[0].mxu0
        %v584 = vadd.f32 %v342, %v583
        %v585 = vpop.f32.mrb[0].mxu0
        %v586 = vadd.f32 %v342, %v585
        %587 = vmatprep.mubr.f32.mxu0 0.0
        %588 = vmatmul.mubr.f32.gmra.mrb[0].mxu0 %v384
        %v589 = vpop.f32.mrb[0].mxu0
        %v590 = vadd.f32 %v347, %v589
        %v591 = vpop.f32.mrb[0].mxu0
        %v592 = vadd.f32 %v347, %v591
        %593 = vmatprep.mubr.f32.mxu0 0.0
        %594 = vmatmul.mubr.f32.gmra.mrb[0].mxu0 %v387
        %v595 = vpop.f32.mrb[0].mxu0
        %v596 = vadd.f32 %v352, %v595
        %v597 = vpop.f32.mrb[0].mxu0
        %v598 = vadd.f32 %v352, %v597
        %599 = vmatprep.mubr.f32.mxu0 0.0
        %600 = vmatmul.mubr.f32.gmra.mrb[0].mxu0 %v390
        %v601 = vpop.f32.mrb[0].mxu0
        %v602 = vadd.f32 %v357, %v601
        %v603 = vpop.f32.mrb[0].mxu0
        %v604 = vadd.f32 %v357, %v603
        %605 = vmatprep.mubr.f32.mxu0 0.0
        %606 = vmatmul.mubr.f32.gmra.mrb[0].mxu0 %v393
        %v607 = vpop.f32.mrb[0].mxu0
        %v608 = vadd.f32 %v362, %v607
        %v609 = vpop.f32.mrb[0].mxu0
        %v610 = vadd.f32 %v362, %v609
        %611 = vmatprep.mubr.f32.mxu0 0.0
        %612 = vmatmul.mubr.f32.gmra.mrb[0].mxu0 %v396
        %v613 = vpop.f32.mrb[0].mxu0
        %v614 = vadd.f32 %v367, %v613
        %v615 = vpop.f32.mrb[0].mxu0
        %v616 = vadd.f32 %v367, %v615
        %617 = vmatprep.mubr.f32.mxu0 0.0
        %618 = vmatmul.mubr.f32.gmra.mrb[0].mxu0 %v399
        %v619 = vpop.f32.mrb[0].mxu0
        %v620 = vadd.f32 %v372, %v619
        %v621 = vpop.f32.mrb[0].mxu0
        %v622 = vadd.f32 %v372, %v621
        %623 = vmatprep.mubr.f32.mxu0 0.0
        %624 = vmatmul.mubr.f32.gmra.mrb[0].mxu0 %v402
        %v625 = vpop.f32.mrb[0].mxu0
        %v626 = vadd.f32 %v377, %v625
        %v627 = vpop.f32.mrb[0].mxu0
        %v628 = vadd.f32 %v377, %v627
        %629 = vdwg.mxu0
        %vm630 = vcmp.gt.f32.partialorder %v471, 0.0
        %vm631 = vcmp.gt.f32.partialorder %v473, 0.0
        %vm632 = vcmp.gt.f32.partialorder %v584, 0.0
        %vm633 = vcmp.gt.f32.partialorder %v586, 0.0
        %vm634 = vcmp.gt.f32.partialorder %v477, 0.0
        %vm635 = vcmp.gt.f32.partialorder %v479, 0.0
        %vm636 = vcmp.gt.f32.partialorder %v590, 0.0
        %vm637 = vcmp.gt.f32.partialorder %v592, 0.0
        %vm638 = vcmp.gt.f32.partialorder %v483, 0.0
        %vm639 = vcmp.gt.f32.partialorder %v485, 0.0
        %vm640 = vcmp.gt.f32.partialorder %v596, 0.0
        %vm641 = vcmp.gt.f32.partialorder %v598, 0.0
        %vm642 = vcmp.gt.f32.partialorder %v489, 0.0
        %vm643 = vcmp.gt.f32.partialorder %v491, 0.0
        %vm644 = vcmp.gt.f32.partialorder %v602, 0.0
        %vm645 = vcmp.gt.f32.partialorder %v604, 0.0
        %vm646 = vcmp.gt.f32.partialorder %v495, 0.0
        %vm647 = vcmp.gt.f32.partialorder %v497, 0.0
        %vm648 = vcmp.gt.f32.partialorder %v608, 0.0
        %vm649 = vcmp.gt.f32.partialorder %v610, 0.0
        %vm650 = vcmp.gt.f32.partialorder %v501, 0.0
        %vm651 = vcmp.gt.f32.partialorder %v503, 0.0
        %vm652 = vcmp.gt.f32.partialorder %v614, 0.0
        %vm653 = vcmp.gt.f32.partialorder %v616, 0.0
        %vm654 = vcmp.gt.f32.partialorder %v507, 0.0
        %vm655 = vcmp.gt.f32.partialorder %v509, 0.0
        %vm656 = vcmp.gt.f32.partialorder %v620, 0.0
        %vm657 = vcmp.gt.f32.partialorder %v622, 0.0
        %vm658 = vcmp.gt.f32.partialorder %v513, 0.0
        %vm659 = vcmp.gt.f32.partialorder %v515, 0.0
        %vm660 = vcmp.gt.f32.partialorder %v626, 0.0
        %vm661 = vcmp.gt.f32.partialorder %v628, 0.0
        %v662 = vmul.f32 %v471, 0.01
        %v663 = vmul.f32 %v473, 0.01
        %v664 = vmul.f32 %v584, 0.01
        %v665 = vmul.f32 %v586, 0.01
        %v666 = vmul.f32 %v477, 0.01
        %v667 = vmul.f32 %v479, 0.01
        %v668 = vmul.f32 %v590, 0.01
        %v669 = vmul.f32 %v592, 0.01
        %v670 = vmul.f32 %v483, 0.01
        %v671 = vmul.f32 %v485, 0.01
        %v672 = vmul.f32 %v596, 0.01
        %v673 = vmul.f32 %v598, 0.01
        %v674 = vmul.f32 %v489, 0.01
        %v675 = vmul.f32 %v491, 0.01
        %v676 = vmul.f32 %v602, 0.01
        %v677 = vmul.f32 %v604, 0.01
        %v678 = vmul.f32 %v495, 0.01
        %v679 = vmul.f32 %v497, 0.01
        %v680 = vmul.f32 %v608, 0.01
        %v681 = vmul.f32 %v610, 0.01
        %v682 = vmul.f32 %v501, 0.01
        %v683 = vmul.f32 %v503, 0.01
        %v684 = vmul.f32 %v614, 0.01
        %v685 = vmul.f32 %v616, 0.01
        %v686 = vmul.f32 %v507, 0.01
        %v687 = vmul.f32 %v509, 0.01
        %v688 = vmul.f32 %v620, 0.01
        %v689 = vmul.f32 %v622, 0.01
        %v690 = vmul.f32 %v513, 0.01
        %v691 = vmul.f32 %v515, 0.01
        %v692 = vmul.f32 %v626, 0.01
        %v693 = vmul.f32 %v628, 0.01
        %v694 = vsel %vm630, %v471, %v662
        %v695 = vsel %vm631, %v473, %v663
        %v696 = vsel %vm632, %v584, %v664
        %v697 = vsel %vm633, %v586, %v665
        %v698 = vsel %vm634, %v477, %v666
        %v699 = vsel %vm635, %v479, %v667
        %v700 = vsel %vm636, %v590, %v668
        %v701 = vsel %vm637, %v592, %v669
        %v702 = vsel %vm638, %v483, %v670
        %v703 = vsel %vm639, %v485, %v671
        %v704 = vsel %vm640, %v596, %v672
        %v705 = vsel %vm641, %v598, %v673
        %v706 = vsel %vm642, %v489, %v674
        %v707 = vsel %vm643, %v491, %v675
        %v708 = vsel %vm644, %v602, %v676
        %v709 = vsel %vm645, %v604, %v677
        %v710 = vsel %vm646, %v495, %v678
        %v711 = vsel %vm647, %v497, %v679
        %v712 = vsel %vm648, %v608, %v680
        %v713 = vsel %vm649, %v610, %v681
        %v714 = vsel %vm650, %v501, %v682
        %v715 = vsel %vm651, %v503, %v683
        %v716 = vsel %vm652, %v614, %v684
        %v717 = vsel %vm653, %v616, %v685
        %v718 = vsel %vm654, %v507, %v686
        %v719 = vsel %vm655, %v509, %v687
        %v720 = vsel %vm656, %v620, %v688
        %v721 = vsel %vm657, %v622, %v689
        %v722 = vsel %vm658, %v513, %v690
        %v723 = vsel %vm659, %v515, %v691
        %v724 = vsel %vm660, %v626, %v692
        %v725 = vsel %vm661, %v628, %v693
        %v726 = vld [vmem:[%s3] sm:$0xff]
        %v727 = vld [vmem:[%s3 + $0x8] sm:$0xff]
        %v728 = vld [vmem:[%s3 + $0x10] sm:$0xff]
        %v729 = vld [vmem:[%s3 + $0x18] sm:$0xff]
        %v730 = vld [vmem:[%s3 + $0x20] sm:$0xff]
        %v731 = vld [vmem:[%s3 + $0x28] sm:$0xff]
        %v732 = vld [vmem:[%s3 + $0x30] sm:$0xff]
        %v733 = vld [vmem:[%s3 + $0x38] sm:$0xff]
        %v734 = vld [vmem:[%s4] sm:$0xff]
        %v735 = vld [vmem:[%s4 + $0x8] sm:$0xff]
        %v736 = vld [vmem:[%s4 + $0x10] sm:$0xff]
        %v737 = vld [vmem:[%s4 + $0x18] sm:$0xff]
        %v738 = vld [vmem:[%s4 + $0x20] sm:$0xff]
        %v739 = vld [vmem:[%s4 + $0x28] sm:$0xff]
        %v740 = vld [vmem:[%s4 + $0x30] sm:$0xff]
        %v741 = vld [vmem:[%s4 + $0x38] sm:$0xff]
        %743 = vset.pattern.permute.xlu0 0
        %744 = vperm.xlu0 %743, %v734
        %v745 = vpop.permute.xlu0 %744
        %748 = vset.pattern.permute.xlu0 0
        %749 = vperm.xlu0 %748, %v735
        %v750 = vpop.permute.xlu0 %749
        %753 = vset.pattern.permute.xlu0 0
        %754 = vperm.xlu0 %753, %v736
        %v755 = vpop.permute.xlu0 %754
        %758 = vset.pattern.permute.xlu0 0
        %759 = vperm.xlu0 %758, %v737
        %v760 = vpop.permute.xlu0 %759
        %763 = vset.pattern.permute.xlu0 0
        %764 = vperm.xlu0 %763, %v738
        %v765 = vpop.permute.xlu0 %764
        %768 = vset.pattern.permute.xlu0 0
        %769 = vperm.xlu0 %768, %v739
        %v770 = vpop.permute.xlu0 %769
        %773 = vset.pattern.permute.xlu0 0
        %774 = vperm.xlu0 %773, %v740
        %v775 = vpop.permute.xlu0 %774
        %778 = vset.pattern.permute.xlu0 0
        %779 = vperm.xlu0 %778, %v741
        %v780 = vpop.permute.xlu0 %779
        %vm782 = vcmask 523264
        %v784 = vsel %vm782, %v726, 0
        %v787 = vsel %vm782, %v727, 0
        %v790 = vsel %vm782, %v728, 0
        %v793 = vsel %vm782, %v729, 0
        %v796 = vsel %vm782, %v730, 0
        %v799 = vsel %vm782, %v731, 0
        %v802 = vsel %vm782, %v732, 0
        %v805 = vsel %vm782, %v733, 0
        %807 = vmatprep.subr.mxu0 %v695
        %808 = vmatpush1.msra.mxu0 %v694
        %809 = vmatprep.subr.mxu0 %v699
        %810 = vmatpush1.msra.mxu0 %v698
        %811 = vmatprep.subr.mxu0 %v703
        %812 = vmatpush1.msra.mxu0 %v702
        %813 = vmatprep.subr.mxu0 %v707
        %814 = vmatpush1.msra.mxu0 %v706
        %815 = vmatprep.subr.mxu0 %v711
        %816 = vmatpush1.msra.mxu0 %v710
        %817 = vmatprep.subr.mxu0 %v715
        %818 = vmatpush1.msra.mxu0 %v714
        %819 = vmatprep.subr.mxu0 %v719
        %820 = vmatpush1.msra.mxu0 %v718
        %821 = vmatprep.subr.mxu0 %v723
        %822 = vmatpush1.msra.mxu0 %v722
        %823 = vmatprep.subr.mxu0 0.0
        %824 = vmatpush1.msra.mxu0 0.0
        %825 = vmatprep.subr.mxu0 0.0
        %826 = vmatpush1.msra.mxu0 0.0
        %827 = vmatprep.subr.mxu0 0.0
        %828 = vmatpush1.msra.mxu0 0.0
        %829 = vmatprep.subr.mxu0 0.0
        %830 = vmatpush1.msra.mxu0 0.0
        %831 = vmatprep.subr.mxu0 0.0
        %832 = vmatpush1.msra.mxu0 0.0
        %833 = vmatprep.subr.mxu0 0.0
        %834 = vmatpush1.msra.mxu0 0.0
        %835 = vmatprep.subr.mxu0 0.0
        %836 = vmatpush1.msra.mxu0 0.0
        %837 = vmatprep.subr.mxu0 0.0
        %838 = vmatpush1.msra.mxu0 0.0
        %839 = vmatprep.subr.mxu0 0.0
        %840 = vmatpush1.msra.mxu0 0.0
        %841 = vmatprep.subr.mxu0 0.0
        %842 = vmatpush1.msra.mxu0 0.0
        %843 = vmatprep.subr.mxu0 0.0
        %844 = vmatpush1.msra.mxu0 0.0
        %845 = vmatprep.subr.mxu0 0.0
        %846 = vmatpush1.msra.mxu0 0.0
        %847 = vmatprep.subr.mxu0 0.0
        %848 = vmatpush1.msra.mxu0 0.0
        %849 = vmatprep.subr.mxu0 0.0
        %850 = vmatpush1.msra.mxu0 0.0
        %851 = vmatprep.subr.mxu0 0.0
        %852 = vmatpush1.msra.mxu0 0.0
        %853 = vmatprep.subr.mxu0 0.0
        %854 = vmatpush1.msra.mxu0 0.0
        %855 = vmatprep.subr.mxu0 0.0
        %856 = vmatpush1.msra.mxu0 0.0
        %857 = vmatprep.subr.mxu0 0.0
        %858 = vmatpush1.msra.mxu0 0.0
        %859 = vmatprep.subr.mxu0 0.0
        %860 = vmatpush1.msra.mxu0 0.0
        %861 = vmatprep.subr.mxu0 0.0
        %862 = vmatpush1.msra.mxu0 0.0
        %863 = vmatprep.subr.mxu0 0.0
        %864 = vmatpush1.msra.mxu0 0.0
        %865 = vmatprep.subr.mxu0 0.0
        %866 = vmatpush1.msra.mxu0 0.0
        %867 = vmatprep.subr.mxu0 0.0
        %868 = vmatpush1.msra.mxu0 0.0
        %869 = vmatprep.subr.mxu0 0.0
        %870 = vmatpush1.msra.mxu0 0.0
        %871 = vmatprep.mubr.f32.mxu0 0.0
        %872 = vmatmul.mubr.f32.gmra.mrb[0].mxu0 %v784
        %v873 = vpop.f32.mrb[0].mxu0
        %v874 = vadd.f32 %v745, %v873
        %v875 = vpop.f32.mrb[0].mxu0
        %v876 = vadd.f32 %v745, %v875
        %877 = vmatprep.mubr.f32.mxu0 0.0
        %878 = vmatmul.mubr.f32.gmra.mrb[0].mxu0 %v787
        %v879 = vpop.f32.mrb[0].mxu0
        %v880 = vadd.f32 %v750, %v879
        %v881 = vpop.f32.mrb[0].mxu0
        %v882 = vadd.f32 %v750, %v881
        %883 = vmatprep.mubr.f32.mxu0 0.0
        %884 = vmatmul.mubr.f32.gmra.mrb[0].mxu0 %v790
        %v885 = vpop.f32.mrb[0].mxu0
        %v886 = vadd.f32 %v755, %v885
        %v887 = vpop.f32.mrb[0].mxu0
        %v888 = vadd.f32 %v755, %v887
        %889 = vmatprep.mubr.f32.mxu0 0.0
        %890 = vmatmul.mubr.f32.gmra.mrb[0].mxu0 %v793
        %v891 = vpop.f32.mrb[0].mxu0
        %v892 = vadd.f32 %v760, %v891
        %v893 = vpop.f32.mrb[0].mxu0
        %v894 = vadd.f32 %v760, %v893
        %895 = vmatprep.mubr.f32.mxu0 0.0
        %896 = vmatmul.mubr.f32.gmra.mrb[0].mxu0 %v796
        %v897 = vpop.f32.mrb[0].mxu0
        %v898 = vadd.f32 %v765, %v897
        %v899 = vpop.f32.mrb[0].mxu0
        %v900 = vadd.f32 %v765, %v899
        %901 = vmatprep.mubr.f32.mxu0 0.0
        %902 = vmatmul.mubr.f32.gmra.mrb[0].mxu0 %v799
        %v903 = vpop.f32.mrb[0].mxu0
        %v904 = vadd.f32 %v770, %v903
        %v905 = vpop.f32.mrb[0].mxu0
        %v906 = vadd.f32 %v770, %v905
        %907 = vmatprep.mubr.f32.mxu0 0.0
        %908 = vmatmul.mubr.f32.gmra.mrb[0].mxu0 %v802
        %v909 = vpop.f32.mrb[0].mxu0
        %v910 = vadd.f32 %v775, %v909
        %v911 = vpop.f32.mrb[0].mxu0
        %v912 = vadd.f32 %v775, %v911
        %913 = vmatprep.mubr.f32.mxu0 0.0
        %914 = vmatmul.mubr.f32.gmra.mrb[0].mxu0 %v805
        %v915 = vpop.f32.mrb[0].mxu0
        %v916 = vadd.f32 %v780, %v915
        %v917 = vpop.f32.mrb[0].mxu0
        %v918 = vadd.f32 %v780, %v917
        %919 = vdwg.mxu0
        %920 = vmatprep.subr.mxu0 %v697
        %921 = vmatpush1.msra.mxu0 %v696
        %922 = vmatprep.subr.mxu0 %v701
        %923 = vmatpush1.msra.mxu0 %v700
        %924 = vmatprep.subr.mxu0 %v705
        %925 = vmatpush1.msra.mxu0 %v704
        %926 = vmatprep.subr.mxu0 %v709
        %927 = vmatpush1.msra.mxu0 %v708
        %928 = vmatprep.subr.mxu0 %v713
        %929 = vmatpush1.msra.mxu0 %v712
        %930 = vmatprep.subr.mxu0 %v717
        %931 = vmatpush1.msra.mxu0 %v716
        %932 = vmatprep.subr.mxu0 %v721
        %933 = vmatpush1.msra.mxu0 %v720
        %934 = vmatprep.subr.mxu0 %v725
        %935 = vmatpush1.msra.mxu0 %v724
        %936 = vmatprep.subr.mxu0 0.0
        %937 = vmatpush1.msra.mxu0 0.0
        %938 = vmatprep.subr.mxu0 0.0
        %939 = vmatpush1.msra.mxu0 0.0
        %940 = vmatprep.subr.mxu0 0.0
        %941 = vmatpush1.msra.mxu0 0.0
        %942 = vmatprep.subr.mxu0 0.0
        %943 = vmatpush1.msra.mxu0 0.0
        %944 = vmatprep.subr.mxu0 0.0
        %945 = vmatpush1.msra.mxu0 0.0
        %946 = vmatprep.subr.mxu0 0.0
        %947 = vmatpush1.msra.mxu0 0.0
        %948 = vmatprep.subr.mxu0 0.0
        %949 = vmatpush1.msra.mxu0 0.0
        %950 = vmatprep.subr.mxu0 0.0
        %951 = vmatpush1.msra.mxu0 0.0
        %952 = vmatprep.subr.mxu0 0.0
        %953 = vmatpush1.msra.mxu0 0.0
        %954 = vmatprep.subr.mxu0 0.0
        %955 = vmatpush1.msra.mxu0 0.0
        %956 = vmatprep.subr.mxu0 0.0
        %957 = vmatpush1.msra.mxu0 0.0
        %958 = vmatprep.subr.mxu0 0.0
        %959 = vmatpush1.msra.mxu0 0.0
        %960 = vmatprep.subr.mxu0 0.0
        %961 = vmatpush1.msra.mxu0 0.0
        %962 = vmatprep.subr.mxu0 0.0
        %963 = vmatpush1.msra.mxu0 0.0
        %964 = vmatprep.subr.mxu0 0.0
        %965 = vmatpush1.msra.mxu0 0.0
        %966 = vmatprep.subr.mxu0 0.0
        %967 = vmatpush1.msra.mxu0 0.0
        %968 = vmatprep.subr.mxu0 0.0
        %969 = vmatpush1.msra.mxu0 0.0
        %970 = vmatprep.subr.mxu0 0.0
        %971 = vmatpush1.msra.mxu0 0.0
        %972 = vmatprep.subr.mxu0 0.0
        %973 = vmatpush1.msra.mxu0 0.0
        %974 = vmatprep.subr.mxu0 0.0
        %975 = vmatpush1.msra.mxu0 0.0
        %976 = vmatprep.subr.mxu0 0.0
        %977 = vmatpush1.msra.mxu0 0.0
        %978 = vmatprep.subr.mxu0 0.0
        %979 = vmatpush1.msra.mxu0 0.0
        %980 = vmatprep.subr.mxu0 0.0
        %981 = vmatpush1.msra.mxu0 0.0
        %982 = vmatprep.subr.mxu0 0.0
        %983 = vmatpush1.msra.mxu0 0.0
        %984 = vmatprep.mubr.f32.mxu0 0.0
        %985 = vmatmul.mubr.f32.gmra.mrb[0].mxu0 %v784
        %v986 = vpop.f32.mrb[0].mxu0
        %v987 = vadd.f32 %v745, %v986
        %v988 = vpop.f32.mrb[0].mxu0
        %v989 = vadd.f32 %v745, %v988
        %990 = vmatprep.mubr.f32.mxu0 0.0
        %991 = vmatmul.mubr.f32.gmra.mrb[0].mxu0 %v787
        %v992 = vpop.f32.mrb[0].mxu0
        %v993 = vadd.f32 %v750, %v992
        %v994 = vpop.f32.mrb[0].mxu0
        %v995 = vadd.f32 %v750, %v994
        %996 = vmatprep.mubr.f32.mxu0 0.0
        %997 = vmatmul.mubr.f32.gmra.mrb[0].mxu0 %v790
        %v998 = vpop.f32.mrb[0].mxu0
        %v999 = vadd.f32 %v755, %v998
        %v1000 = vpop.f32.mrb[0].mxu0
        %v1001 = vadd.f32 %v755, %v1000
        %1002 = vmatprep.mubr.f32.mxu0 0.0
        %1003 = vmatmul.mubr.f32.gmra.mrb[0].mxu0 %v793
        %v1004 = vpop.f32.mrb[0].mxu0
        %v1005 = vadd.f32 %v760, %v1004
        %v1006 = vpop.f32.mrb[0].mxu0
        %v1007 = vadd.f32 %v760, %v1006
        %1008 = vmatprep.mubr.f32.mxu0 0.0
        %1009 = vmatmul.mubr.f32.gmra.mrb[0].mxu0 %v796
        %v1010 = vpop.f32.mrb[0].mxu0
        %v1011 = vadd.f32 %v765, %v1010
        %v1012 = vpop.f32.mrb[0].mxu0
        %v1013 = vadd.f32 %v765, %v1012
        %1014 = vmatprep.mubr.f32.mxu0 0.0
        %1015 = vmatmul.mubr.f32.gmra.mrb[0].mxu0 %v799
        %v1016 = vpop.f32.mrb[0].mxu0
        %v1017 = vadd.f32 %v770, %v1016
        %v1018 = vpop.f32.mrb[0].mxu0
        %v1019 = vadd.f32 %v770, %v1018
        %1020 = vmatprep.mubr.f32.mxu0 0.0
        %1021 = vmatmul.mubr.f32.gmra.mrb[0].mxu0 %v802
        %v1022 = vpop.f32.mrb[0].mxu0
        %v1023 = vadd.f32 %v775, %v1022
        %v1024 = vpop.f32.mrb[0].mxu0
        %v1025 = vadd.f32 %v775, %v1024
        %1026 = vmatprep.mubr.f32.mxu0 0.0
        %1027 = vmatmul.mubr.f32.gmra.mrb[0].mxu0 %v805
        %v1028 = vpop.f32.mrb[0].mxu0
        %v1029 = vadd.f32 %v780, %v1028
        %v1030 = vpop.f32.mrb[0].mxu0
        %v1031 = vadd.f32 %v780, %v1030
        %1032 = vdwg.mxu0
        %vm1033 = vcmp.gt.f32.partialorder %v874, 0.0
        %vm1034 = vcmp.gt.f32.partialorder %v876, 0.0
        %vm1035 = vcmp.gt.f32.partialorder %v987, 0.0
        %vm1036 = vcmp.gt.f32.partialorder %v989, 0.0
        %vm1037 = vcmp.gt.f32.partialorder %v880, 0.0
        %vm1038 = vcmp.gt.f32.partialorder %v882, 0.0
        %vm1039 = vcmp.gt.f32.partialorder %v993, 0.0
        %vm1040 = vcmp.gt.f32.partialorder %v995, 0.0
        %vm1041 = vcmp.gt.f32.partialorder %v886, 0.0
        %vm1042 = vcmp.gt.f32.partialorder %v888, 0.0
        %vm1043 = vcmp.gt.f32.partialorder %v999, 0.0
        %vm1044 = vcmp.gt.f32.partialorder %v1001, 0.0
        %vm1045 = vcmp.gt.f32.partialorder %v892, 0.0
        %vm1046 = vcmp.gt.f32.partialorder %v894, 0.0
        %vm1047 = vcmp.gt.f32.partialorder %v1005, 0.0
        %vm1048 = vcmp.gt.f32.partialorder %v1007, 0.0
        %vm1049 = vcmp.gt.f32.partialorder %v898, 0.0
        %vm1050 = vcmp.gt.f32.partialorder %v900, 0.0
        %vm1051 = vcmp.gt.f32.partialorder %v1011, 0.0
        %vm1052 = vcmp.gt.f32.partialorder %v1013, 0.0
        %vm1053 = vcmp.gt.f32.partialorder %v904, 0.0
        %vm1054 = vcmp.gt.f32.partialorder %v906, 0.0
        %vm1055 = vcmp.gt.f32.partialorder %v1017, 0.0
        %vm1056 = vcmp.gt.f32.partialorder %v1019, 0.0
        %vm1057 = vcmp.gt.f32.partialorder %v910, 0.0
        %vm1058 = vcmp.gt.f32.partialorder %v912, 0.0
        %vm1059 = vcmp.gt.f32.partialorder %v1023, 0.0
        %vm1060 = vcmp.gt.f32.partialorder %v1025, 0.0
        %vm1061 = vcmp.gt.f32.partialorder %v916, 0.0
        %vm1062 = vcmp.gt.f32.partialorder %v918, 0.0
        %vm1063 = vcmp.gt.f32.partialorder %v1029, 0.0
        %vm1064 = vcmp.gt.f32.partialorder %v1031, 0.0
        %v1065 = vmul.f32 %v874, 0.01
        %v1066 = vmul.f32 %v876, 0.01
        %v1067 = vmul.f32 %v987, 0.01
        %v1068 = vmul.f32 %v989, 0.01
        %v1069 = vmul.f32 %v880, 0.01
        %v1070 = vmul.f32 %v882, 0.01
        %v1071 = vmul.f32 %v993, 0.01
        %v1072 = vmul.f32 %v995, 0.01
        %v1073 = vmul.f32 %v886, 0.01
        %v1074 = vmul.f32 %v888, 0.01
        %v1075 = vmul.f32 %v999, 0.01
        %v1076 = vmul.f32 %v1001, 0.01
        %v1077 = vmul.f32 %v892, 0.01
        %v1078 = vmul.f32 %v894, 0.01
        %v1079 = vmul.f32 %v1005, 0.01
        %v1080 = vmul.f32 %v1007, 0.01
        %v1081 = vmul.f32 %v898, 0.01
        %v1082 = vmul.f32 %v900, 0.01
        %v1083 = vmul.f32 %v1011, 0.01
        %v1084 = vmul.f32 %v1013, 0.01
        %v1085 = vmul.f32 %v904, 0.01
        %v1086 = vmul.f32 %v906, 0.01
        %v1087 = vmul.f32 %v1017, 0.01
        %v1088 = vmul.f32 %v1019, 0.01
        %v1089 = vmul.f32 %v910, 0.01
        %v1090 = vmul.f32 %v912, 0.01
        %v1091 = vmul.f32 %v1023, 0.01
        %v1092 = vmul.f32 %v1025, 0.01
        %v1093 = vmul.f32 %v916, 0.01
        %v1094 = vmul.f32 %v918, 0.01
        %v1095 = vmul.f32 %v1029, 0.01
        %v1096 = vmul.f32 %v1031, 0.01
        %v1097 = vsel %vm1033, %v874, %v1065
        %v1098 = vsel %vm1034, %v876, %v1066
        %v1099 = vsel %vm1035, %v987, %v1067
        %v1100 = vsel %vm1036, %v989, %v1068
        %v1101 = vsel %vm1037, %v880, %v1069
        %v1102 = vsel %vm1038, %v882, %v1070
        %v1103 = vsel %vm1039, %v993, %v1071
        %v1104 = vsel %vm1040, %v995, %v1072
        %v1105 = vsel %vm1041, %v886, %v1073
        %v1106 = vsel %vm1042, %v888, %v1074
        %v1107 = vsel %vm1043, %v999, %v1075
        %v1108 = vsel %vm1044, %v1001, %v1076
        %v1109 = vsel %vm1045, %v892, %v1077
        %v1110 = vsel %vm1046, %v894, %v1078
        %v1111 = vsel %vm1047, %v1005, %v1079
        %v1112 = vsel %vm1048, %v1007, %v1080
        %v1113 = vsel %vm1049, %v898, %v1081
        %v1114 = vsel %vm1050, %v900, %v1082
        %v1115 = vsel %vm1051, %v1011, %v1083
        %v1116 = vsel %vm1052, %v1013, %v1084
        %v1117 = vsel %vm1053, %v904, %v1085
        %v1118 = vsel %vm1054, %v906, %v1086
        %v1119 = vsel %vm1055, %v1017, %v1087
        %v1120 = vsel %vm1056, %v1019, %v1088
        %v1121 = vsel %vm1057, %v910, %v1089
        %v1122 = vsel %vm1058, %v912, %v1090
        %v1123 = vsel %vm1059, %v1023, %v1091
        %v1124 = vsel %vm1060, %v1025, %v1092
        %v1125 = vsel %vm1061, %v916, %v1093
        %v1126 = vsel %vm1062, %v918, %v1094
        %v1127 = vsel %vm1063, %v1029, %v1095
        %v1128 = vsel %vm1064, %v1031, %v1096
        %v1129 = vld [vmem:[%s5] sm:$0x1]
        %v1130 = vld [vmem:[#allocation2] sm:$0x1]
        %1132 = vset.pattern.permute.xlu0 0
        %1133 = vperm.xlu0 %1132, %v1130
        %v1134 = vpop.permute.xlu0 %1133
        %v1136 = vlaneseq
        %v1137 = vshrl.u32 %v1136, 7
        %v1138 = vsub.s32 0, %v1137
        %v1139 = vrot.slane %v1134, %v1138
        %v1141 = vsel %vm782, %v1129, 0
        %1143 = vmatprep.subr.mxu0 %v1098
        %1144 = vmatpush1.msra.mxu0 %v1097
        %1145 = vmatprep.subr.mxu0 %v1102
        %1146 = vmatpush1.msra.mxu0 %v1101
        %1147 = vmatprep.subr.mxu0 %v1106
        %1148 = vmatpush1.msra.mxu0 %v1105
        %1149 = vmatprep.subr.mxu0 %v1110
        %1150 = vmatpush1.msra.mxu0 %v1109
        %1151 = vmatprep.subr.mxu0 %v1114
        %1152 = vmatpush1.msra.mxu0 %v1113
        %1153 = vmatprep.subr.mxu0 %v1118
        %1154 = vmatpush1.msra.mxu0 %v1117
        %1155 = vmatprep.subr.mxu0 %v1122
        %1156 = vmatpush1.msra.mxu0 %v1121
        %1157 = vmatprep.subr.mxu0 %v1126
        %1158 = vmatpush1.msra.mxu0 %v1125
        %1159 = vmatprep.subr.mxu0 0.0
        %1160 = vmatpush1.msra.mxu0 0.0
        %1161 = vmatprep.subr.mxu0 0.0
        %1162 = vmatpush1.msra.mxu0 0.0
        %1163 = vmatprep.subr.mxu0 0.0
        %1164 = vmatpush1.msra.mxu0 0.0
        %1165 = vmatprep.subr.mxu0 0.0
        %1166 = vmatpush1.msra.mxu0 0.0
        %1167 = vmatprep.subr.mxu0 0.0
        %1168 = vmatpush1.msra.mxu0 0.0
        %1169 = vmatprep.subr.mxu0 0.0
        %1170 = vmatpush1.msra.mxu0 0.0
        %1171 = vmatprep.subr.mxu0 0.0
        %1172 = vmatpush1.msra.mxu0 0.0
        %1173 = vmatprep.subr.mxu0 0.0
        %1174 = vmatpush1.msra.mxu0 0.0
        %1175 = vmatprep.subr.mxu0 0.0
        %1176 = vmatpush1.msra.mxu0 0.0
        %1177 = vmatprep.subr.mxu0 0.0
        %1178 = vmatpush1.msra.mxu0 0.0
        %1179 = vmatprep.subr.mxu0 0.0
        %1180 = vmatpush1.msra.mxu0 0.0
        %1181 = vmatprep.subr.mxu0 0.0
        %1182 = vmatpush1.msra.mxu0 0.0
        %1183 = vmatprep.subr.mxu0 0.0
        %1184 = vmatpush1.msra.mxu0 0.0
        %1185 = vmatprep.subr.mxu0 0.0
        %1186 = vmatpush1.msra.mxu0 0.0
        %1187 = vmatprep.subr.mxu0 0.0
        %1188 = vmatpush1.msra.mxu0 0.0
        %1189 = vmatprep.subr.mxu0 0.0
        %1190 = vmatpush1.msra.mxu0 0.0
        %1191 = vmatprep.subr.mxu0 0.0
        %1192 = vmatpush1.msra.mxu0 0.0
        %1193 = vmatprep.subr.mxu0 0.0
        %1194 = vmatpush1.msra.mxu0 0.0
        %1195 = vmatprep.subr.mxu0 0.0
        %1196 = vmatpush1.msra.mxu0 0.0
        %1197 = vmatprep.subr.mxu0 0.0
        %1198 = vmatpush1.msra.mxu0 0.0
        %1199 = vmatprep.subr.mxu0 0.0
        %1200 = vmatpush1.msra.mxu0 0.0
        %1201 = vmatprep.subr.mxu0 0.0
        %1202 = vmatpush1.msra.mxu0 0.0
        %1203 = vmatprep.subr.mxu0 0.0
        %1204 = vmatpush1.msra.mxu0 0.0
        %1205 = vmatprep.subr.mxu0 0.0
        %1206 = vmatpush1.msra.mxu0 0.0
        %1207 = vmatprep.mubr.f32.mxu0 0.0
        %1208 = vmatmul.mubr.f32.gmra.mrb[0].mxu0 %v1141
        %v1209 = vpop.f32.mrb[0].mxu0
        %v1210 = vadd.f32 %v1139, %v1209
        %v1211 = vpop.f32.mrb[0].mxu0
        %v1212 = vadd.f32 %v1139, %v1211
        %1213 = vdwg.mxu0
        %1214 = vmatprep.subr.mxu0 %v1100
        %1215 = vmatpush1.msra.mxu0 %v1099
        %1216 = vmatprep.subr.mxu0 %v1104
        %1217 = vmatpush1.msra.mxu0 %v1103
        %1218 = vmatprep.subr.mxu0 %v1108
        %1219 = vmatpush1.msra.mxu0 %v1107
        %1220 = vmatprep.subr.mxu0 %v1112
        %1221 = vmatpush1.msra.mxu0 %v1111
        %1222 = vmatprep.subr.mxu0 %v1116
        %1223 = vmatpush1.msra.mxu0 %v1115
        %1224 = vmatprep.subr.mxu0 %v1120
        %1225 = vmatpush1.msra.mxu0 %v1119
        %1226 = vmatprep.subr.mxu0 %v1124
        %1227 = vmatpush1.msra.mxu0 %v1123
        %1228 = vmatprep.subr.mxu0 %v1128
        %1229 = vmatpush1.msra.mxu0 %v1127
        %1230 = vmatprep.subr.mxu0 0.0
        %1231 = vmatpush1.msra.mxu0 0.0
        %1232 = vmatprep.subr.mxu0 0.0
        %1233 = vmatpush1.msra.mxu0 0.0
        %1234 = vmatprep.subr.mxu0 0.0
        %1235 = vmatpush1.msra.mxu0 0.0
        %1236 = vmatprep.subr.mxu0 0.0
        %1237 = vmatpush1.msra.mxu0 0.0
        %1238 = vmatprep.subr.mxu0 0.0
        %1239 = vmatpush1.msra.mxu0 0.0
        %1240 = vmatprep.subr.mxu0 0.0
        %1241 = vmatpush1.msra.mxu0 0.0
        %1242 = vmatprep.subr.mxu0 0.0
        %1243 = vmatpush1.msra.mxu0 0.0
        %1244 = vmatprep.subr.mxu0 0.0
        %1245 = vmatpush1.msra.mxu0 0.0
        %1246 = vmatprep.subr.mxu0 0.0
        %1247 = vmatpush1.msra.mxu0 0.0
        %1248 = vmatprep.subr.mxu0 0.0
        %1249 = vmatpush1.msra.mxu0 0.0
        %1250 = vmatprep.subr.mxu0 0.0
        %1251 = vmatpush1.msra.mxu0 0.0
        %1252 = vmatprep.subr.mxu0 0.0
        %1253 = vmatpush1.msra.mxu0 0.0
        %1254 = vmatprep.subr.mxu0 0.0
        %1255 = vmatpush1.msra.mxu0 0.0
        %1256 = vmatprep.subr.mxu0 0.0
        %1257 = vmatpush1.msra.mxu0 0.0
        %1258 = vmatprep.subr.mxu0 0.0
        %1259 = vmatpush1.msra.mxu0 0.0
        %1260 = vmatprep.subr.mxu0 0.0
        %1261 = vmatpush1.msra.mxu0 0.0
        %1262 = vmatprep.subr.mxu0 0.0
        %1263 = vmatpush1.msra.mxu0 0.0
        %1264 = vmatprep.subr.mxu0 0.0
        %1265 = vmatpush1.msra.mxu0 0.0
        %1266 = vmatprep.subr.mxu0 0.0
        %1267 = vmatpush1.msra.mxu0 0.0
        %1268 = vmatprep.subr.mxu0 0.0
        %1269 = vmatpush1.msra.mxu0 0.0
        %1270 = vmatprep.subr.mxu0 0.0
        %1271 = vmatpush1.msra.mxu0 0.0
        %1272 = vmatprep.subr.mxu0 0.0
        %1273 = vmatpush1.msra.mxu0 0.0
        %1274 = vmatprep.subr.mxu0 0.0
        %1275 = vmatpush1.msra.mxu0 0.0
        %1276 = vmatprep.subr.mxu0 0.0
        %1277 = vmatpush1.msra.mxu0 0.0
        %1278 = vmatprep.mubr.f32.mxu0 0.0
        %1279 = vmatmul.mubr.f32.gmra.mrb[0].mxu0 %v1141
        %v1280 = vpop.f32.mrb[0].mxu0
        %v1281 = vadd.f32 %v1139, %v1280
        %v1282 = vpop.f32.mrb[0].mxu0
        %v1283 = vadd.f32 %v1139, %v1282
        %1284 = vdwg.mxu0
        %v1289 = vcombine.low %v1210, %v1212
        %v1290 = vcombine.low %v1281, %v1283
        %v1292 = vunpack.c.l.s4 1966171168
        %v1293 = vunpack.c.0.s8 %v1292
        %v1294 = vlaneseq
        %v1295 = vshrl.u32 %v1294, 7
        %v1296 = vsub.s32 %v1293, %v1295
        %v1297 = vrot.slane %v1289, %v1296
        %v1299 = vunpack.c.l.s4 1966171168
        %v1300 = vunpack.c.0.s8 %v1299
        %v1301 = vlaneseq
        %v1302 = vshrl.u32 %v1301, 7
        %v1303 = vsub.s32 %v1300, %v1302
        %v1304 = vrot.slane %v1290, %v1303
        %v1305 = vcombine.low %v1297, %v1304
        %v1307 = vunpack.c.l.s4 1966171168
        %v1308 = vunpack.c.0.s8 %v1307
        %v1309 = vlaneseq
        %v1310 = vshrl.u32 %v1309, 7
        %v1311 = vsub.s32 %v1308, %v1310
        %v1312 = vrot.slane %v1305, %v1311
        %v1314 = vlaneseq
        %vm1315 = vcmp.ge.s32.totalorder %v1314, 0
        %vm1316 = vcmp.lt.s32.totalorder %v1314, 512
        %vm1317 = vmand %vm1315, %vm1316
        %1318 = vst.msk [vmem:[%s312] sm:$0xf] %vm1317, %v1312
        %s1319 = sand.u32 %s183, 1
        %s1320 = scalar_lea.sflag [#allocation5], %s1319
        %s1321 = sand.u32 %s183, 1
        %s1322 = smul.addr %s1321, 4
        %s1323 = scalar_lea.vmem [#allocation4], %s1322
        // Predicated region
        $region72: #{tpu_custom_call.1} parent=66 // pred_check
          %p1324 = pneg %p193
        $region73: #{tpu_custom_call.1} parent=66 // pred_check_branch
          %1326 = sbr.rel (%p1324) target = $region75
        $region74: #{tpu_custom_call.1} parent=66 // pred_region
          %s1327 = smul.u32 4, %s23
          %s1329 = ssub.s32 64, 64
          %1330 = vsyncadd %s1320, %s1329
          %s1331 = smul.addr %s1327, 16
          %s1332 = scalar_lea.hbm %s7, %s1331
          %s1334 = sshll.u32 %s1323, 4
          %s1335 = int_to_ptr.vmem [resolvable:$true] %s1334
          %1337 = dma.vmem_to_hbm [thread:$0]  %s1335, 64, %s1332, %s1320
        $region75: #{tpu_custom_call.1} parent=66 // pred_fallthru
          _
      $region67: #{tpu_custom_call.1} parent=5 // pred_fallthru
        _
      %p1338 = scmp.le.s32.totalorder 2, %s18
      // Predicated region
      $region76: #{tpu_custom_call.1} parent=5 // pred_check
        %p1339 = pneg %p1338
      $region77: #{tpu_custom_call.1} parent=5 // pred_check_branch
        %1341 = sbr.rel (%p1339) target = $region79
      $region78: #{tpu_custom_call.1} parent=5 // pred_region
        %s1342 = ssub.s32 %s18, 2
        // Predicated region
        $region80: #{tpu_custom_call.1} parent=78 // pred_check
          %p1343 = pneg %p199
        $region81: #{tpu_custom_call.1} parent=78 // pred_check_branch
          %1345 = sbr.rel (%p1343) target = $region83
        $region82: #{tpu_custom_call.1} parent=78 // pred_region
          %s1346 = sand.u32 %s184, 1
          %s1347 = scalar_lea.sflag [#allocation5], %s1346
          %s1348 = sand.u32 %s184, 1
          %s1349 = smul.addr %s1348, 4
          %s1350 = scalar_lea.vmem [#allocation4], %s1349
          %1351 = dma.done %s1347, 64
        $region83: #{tpu_custom_call.1} parent=78 // pred_fallthru
          _
      $region79: #{tpu_custom_call.1} parent=5 // pred_fallthru
        _
    $region6: #{tpu_custom_call.1} parent=1 // loop_footer
      %s22 = sadd.s32 1, %s18
    $region7: #{tpu_custom_call.1} parent=1 // loop_footer_branch
      %17 = sbr.rel target = $region3
    $region8: #{tpu_custom_call.1} parent=1 // loop_exit
      _
    %1352 = vsyncpa [#allocation5], 1
    %s1353 = scalar_lea.sflag [#allocation5], 1
    %1354 = vsyncpa %s1353, 1

</llo_original>
